<compile_context>
chip_gen: v7x
topology: tpu7x:2x2x1
jax: 0.10.0
libtpu: 0.0.40
codegen_flags: <defaults>
</compile_context>

<pallas_src>
import jax
import jax.numpy as jnp
from jax.experimental import pallas as pl
from jax.experimental.pallas import tpu as pltpu


def _round_up(x, m):
    return ((x + m - 1) // m) * m


def _action_encoder_kernel(a_ref, taub_ref, w12_ref, w3t_ref, b3_ref, out_ref):
    """One (Bt, TT) tile of the fused forward pass.

    h   = swish(actions @ W12 + taub)   with W12 = W1^T @ W2a^T  (fused)
    out = h @ W3^T + b3
    taub = tau @ W2b^T + b1 @ W2a^T + b2 is per-batch-row (precomputed).
    """
    Bt, TT, A = a_ref.shape
    Hp = out_ref.shape[-1]

    rows = a_ref[...].reshape(Bt * TT, A)                       # (Bt*TT, A)
    h = jnp.dot(rows, w12_ref[...],
                preferred_element_type=jnp.float32)             # (Bt*TT, Hp) f32
    h = h.reshape(Bt, TT, Hp) + taub_ref[...]                   # + per-batch bias
    h = h * jax.nn.sigmoid(h)                                   # swish (EUP)

    out = jnp.dot(h.reshape(Bt * TT, Hp).astype(w3t_ref.dtype), w3t_ref[...],
                  preferred_element_type=jnp.float32) + b3_ref[...]
    out_ref[...] = out.reshape(Bt, TT, Hp).astype(out_ref.dtype)


def action_encoder_forward(actions, timesteps, params, *,
                           compute_dtype=jnp.float32,
                           row_tile=256,
                           vmem_limit_bytes=None):
    """actions: (B, T, A), timesteps: (B,) -> (B, T, H) float32."""
    B, T, A = actions.shape
    H = params["b1"].shape[-1]
    assert H % 2 == 0, "sinusoidal positional encoding assumes even hidden_size"
    Hp = _round_up(H, 128)            # lane-dense hidden axis
    Tp = _round_up(T, 8)              # sublane-aligned time axis

    # ---------- tiny wrapper-side prep (O(B*H + A*H^2), one-time) ----------
    W1 = params["W1"].astype(jnp.float32)   # (H, A)
    b1 = params["b1"].astype(jnp.float32)   # (H,)
    W2 = params["W2"].astype(jnp.float32)   # (H, 2H)
    b2 = params["b2"].astype(jnp.float32)   # (H,)
    W3 = params["W3"].astype(jnp.float32)   # (H, H)
    b3 = params["b3"].astype(jnp.float32)   # (H,)

    # Sinusoidal encoding for the B unique timesteps.
    ts = timesteps.astype(jnp.float32)
    half = H // 2
    exponent = -jnp.arange(half, dtype=jnp.float32) * (
        jnp.log(jnp.float32(10000.0)) / half)
    freqs = ts[:, None] * jnp.exp(exponent)                       # (B, half)
    tau = jnp.concatenate([jnp.sin(freqs), jnp.cos(freqs)], -1)   # (B, H)

    w2a_t = W2[:, :H].T                                           # acts on a_emb
    w2b_t = W2[:, H:].T                                           # acts on tau

    # Fuse W1 into W2a (no nonlinearity between them).
    w12 = W1.T @ w2a_t                                            # (A, H)
    taub = tau @ w2b_t + (b1 @ w2a_t + b2)                        # (B, H)

    def pad_last(x, target):
        p = target - x.shape[-1]
        return x if p == 0 else jnp.pad(x, [(0, 0)] * (x.ndim - 1) + [(0, p)])

    w12_p = pad_last(w12, Hp).astype(compute_dtype)                       # (A, Hp)
    w3t_p = jnp.pad(W3.T, ((0, Hp - H), (0, Hp - H))).astype(compute_dtype)  # (Hp, Hp)
    b3_p = pad_last(b3.reshape(1, H), Hp).astype(jnp.float32)             # (1, Hp)
    taub_p = pad_last(taub, Hp).reshape(B, 1, Hp).astype(jnp.float32)     # (B, 1, Hp)

    acts = actions
    if Tp != T:
        acts = jnp.pad(acts, ((0, 0), (0, Tp - T), (0, 0)))
    acts = acts.astype(compute_dtype)                                     # (B, Tp, A)

    # ---------- tile selection: pack ~row_tile MXU rows per grid step ----------
    if Tp >= row_tile:
        TT, Bt = row_tile, 1
    else:
        TT = Tp
        Bt = max(1, min(B, row_tile // TT))
    grid = (pl.cdiv(B, Bt), pl.cdiv(Tp, TT))

    itemsize = jnp.dtype(compute_dtype).itemsize
    weight_bytes = (w12_p.size + w3t_p.size) * itemsize + b3_p.size * 4
    tile_bytes = Bt * TT * A * itemsize + Bt * Hp * 4 + Bt * TT * Hp * 4
    if vmem_limit_bytes is None:
        est = 2 * (weight_bytes + tile_bytes) + (2 << 20)
        vmem_limit_bytes = int(min(64 << 20, max(32 << 20, 2 * est)))

    cost = pl.CostEstimate(
        flops=int(2 * B * Tp * (A * Hp + Hp * Hp)),
        transcendentals=int(B * Tp * Hp),
        bytes_accessed=int(acts.size * itemsize + taub_p.size * 4
                           + weight_bytes + B * Tp * Hp * 4),
    )

    out = pl.pallas_call(
        _action_encoder_kernel,
        out_shape=jax.ShapeDtypeStruct((B, Tp, Hp), jnp.float32),
        grid=grid,
        in_specs=[
            pl.BlockSpec((Bt, TT, A), lambda b, t: (b, t, 0)),   # actions tile
            pl.BlockSpec((Bt, 1, Hp), lambda b, t: (b, 0, 0)),   # per-batch fused bias
            pl.BlockSpec((A, Hp), lambda b, t: (0, 0)),          # W12  (VMEM-resident)
            pl.BlockSpec((Hp, Hp), lambda b, t: (0, 0)),         # W3^T (VMEM-resident)
            pl.BlockSpec((1, Hp), lambda b, t: (0, 0)),          # b3
        ],
        out_specs=pl.BlockSpec((Bt, TT, Hp), lambda b, t: (b, t, 0)),
        compiler_params=pltpu.CompilerParams(
            dimension_semantics=("parallel", "parallel"),
            vmem_limit_bytes=vmem_limit_bytes,
        ),
        cost_estimate=cost,
    )(acts, taub_p, w12_p, w3t_p, b3_p)

    if Tp != T or Hp != H:
        out = out[:, :T, :H]
    return out


def init_params(key, action_dim, hidden_size):
    """Deterministic synthetic parameters matching nn.Linear shapes."""
    ks = jax.random.split(key, 6)

    def linear(kw, kb, fan_in, fan_out):
        bound = 1.0 / jnp.sqrt(jnp.float32(fan_in))
        w = jax.random.uniform(kw, (fan_out, fan_in), jnp.float32, -bound, bound)
        b = jax.random.uniform(kb, (fan_out,), jnp.float32, -bound, bound)
        return w, b

    W1, b1 = linear(ks[0], ks[1], action_dim, hidden_size)
    W2, b2 = linear(ks[2], ks[3], 2 * hidden_size, hidden_size)
    W3, b3 = linear(ks[4], ks[5], hidden_size, hidden_size)
    return {"W1": W1, "b1": b1, "W2": W2, "b2": b2, "W3": W3, "b3": b3}


def reference_forward(actions, timesteps, params):
    """Plain-JAX reference mirroring the PyTorch module exactly."""
    B, T, _ = actions.shape
    H = params["b1"].shape[-1]
    ts = jnp.broadcast_to(timesteps.astype(jnp.float32)[:, None], (B, T))
    a_emb = actions @ params["W1"].T + params["b1"]
    half = H // 2
    exponent = -jnp.arange(half, dtype=jnp.float32) * (jnp.log(10000.0) / half)
    freqs = ts[..., None] * jnp.exp(exponent)
    tau = jnp.concatenate([jnp.sin(freqs), jnp.cos(freqs)], axis=-1)
    x = jnp.concatenate([a_emb, tau], axis=-1)
    x = x @ params["W2"].T + params["b2"]
    x = x * jax.nn.sigmoid(x)
    return x @ params["W3"].T + params["b3"]


if __name__ == "__main__":
    B, T, ACTION_DIM, HIDDEN = 2, 8, 4, 32

    key = jax.random.PRNGKey(0)
    k_act, k_ts, k_par = jax.random.split(key, 3)

    actions = jax.random.normal(k_act, (B, T, ACTION_DIM), jnp.float32)
    timesteps = jax.random.uniform(k_ts, (B,), jnp.float32, 0.0, 1000.0)
    params = init_params(k_par, ACTION_DIM, HIDDEN)

    ref = reference_forward(actions, timesteps, params)

    # Exact (f32 operands, f32 accumulation) path.
    out = jax.block_until_ready(action_encoder_forward(actions, timesteps, params))
    assert out.shape == (B, T, HIDDEN)
    assert jnp.allclose(out, ref, atol=1e-4, rtol=1e-4), "f32 mismatch vs reference"

    # bf16-operand path (f32 accumulation) — smoke test with loose tolerance.
    out_bf16 = jax.block_until_ready(
        action_encoder_forward(actions, timesteps, params,
                               compute_dtype=jnp.bfloat16))
    assert out_bf16.shape == (B, T, HIDDEN)
    assert float(jnp.max(jnp.abs(out_bf16 - ref))) < 0.2, "bf16 path diverged"

    print("KERNEL_OK")
</pallas_src>

<mosaic_0001>
module attributes {stable_mosaic.version = 11 : i64} {
  func.func @_action_encoder_kernel(%arg0: i32, %arg1: i32, %arg2: memref<2x8x4xf32, #tpu.memory_space<vmem>>, %arg3: memref<2x1x128xf32, #tpu.memory_space<vmem>>, %arg4: memref<4x128xf32, #tpu.memory_space<vmem>>, %arg5: memref<128x128xf32, #tpu.memory_space<vmem>>, %arg6: memref<1x128xf32, #tpu.memory_space<vmem>>, %arg7: memref<2x8x128xf32, #tpu.memory_space<vmem>>) attributes {dimension_semantics = [#tpu.dimension_semantics<parallel>, #tpu.dimension_semantics<parallel>], iteration_bounds = array<i64: 1, 1>, scalar_prefetch = 0 : i64, scratch_operands = 0 : i64, tpu.core_type = #tpu.core_type<tc>, window_params = [{transform_indices = @transform_0, window_bounds = array<i64: 2, 8, 4>}, {transform_indices = @transform_1, window_bounds = array<i64: 2, 1, 128>}, {pipeline_mode = #tpu.pipeline_mode<synchronous>, transform_indices = @transform_2, window_bounds = array<i64: 4, 128>}, {pipeline_mode = #tpu.pipeline_mode<synchronous>, transform_indices = @transform_3, window_bounds = array<i64: 128, 128>}, {pipeline_mode = #tpu.pipeline_mode<synchronous>, transform_indices = @transform_4, window_bounds = array<i64: 1, 128>}, {transform_indices = @transform_5, window_bounds = array<i64: 2, 8, 128>}]} {
    %c0 = arith.constant 0 : index
    %c0_0 = arith.constant 0 : index
    %c0_1 = arith.constant 0 : index
    %0 = vector.load %arg2[%c0, %c0_0, %c0_1] : memref<2x8x4xf32, #tpu.memory_space<vmem>>, vector<2x8x4xf32>
    %1 = vector.shape_cast %0 : vector<2x8x4xf32> to vector<16x4xf32>
    %c0_2 = arith.constant 0 : index
    %c0_3 = arith.constant 0 : index
    %2 = vector.load %arg4[%c0_2, %c0_3] : memref<4x128xf32, #tpu.memory_space<vmem>>, vector<4x128xf32>
    %cst = arith.constant dense<0.000000e+00> : vector<16x128xf32>
    %3 = tpu.matmul %1, %2, %cst {dimension_numbers = #tpu.dot_dimension_numbers<[1], [0], [0], [1], [0, 0, 1, 1], [], []>} : vector<16x4xf32>, vector<4x128xf32>, vector<16x128xf32> -> vector<16x128xf32>
    %4 = vector.shape_cast %3 : vector<16x128xf32> to vector<2x8x128xf32>
    %c0_4 = arith.constant 0 : index
    %c0_5 = arith.constant 0 : index
    %c0_6 = arith.constant 0 : index
    %5 = vector.load %arg3[%c0_4, %c0_5, %c0_6] : memref<2x1x128xf32, #tpu.memory_space<vmem>>, vector<2x1x128xf32>
    %6 = vector.broadcast %5 : vector<2x1x128xf32> to vector<2x8x128xf32>
    %7 = arith.addf %4, %6 : vector<2x8x128xf32>
    %8 = arith.negf %7 : vector<2x8x128xf32>
    %9 = math.exp %8 : vector<2x8x128xf32>
    %cst_7 = arith.constant 1.000000e+00 : f32
    %10 = vector.broadcast %cst_7 : f32 to vector<2x8x128xf32>
    %11 = arith.addf %10, %9 : vector<2x8x128xf32>
    %12 = arith.divf %10, %11 : vector<2x8x128xf32>
    %13 = arith.mulf %7, %12 : vector<2x8x128xf32>
    %14 = vector.shape_cast %13 : vector<2x8x128xf32> to vector<16x128xf32>
    %c0_8 = arith.constant 0 : index
    %c0_9 = arith.constant 0 : index
    %15 = vector.load %arg5[%c0_8, %c0_9] : memref<128x128xf32, #tpu.memory_space<vmem>>, vector<128x128xf32>
    %cst_10 = arith.constant dense<0.000000e+00> : vector<16x128xf32>
    %16 = tpu.matmul %14, %15, %cst_10 {dimension_numbers = #tpu.dot_dimension_numbers<[1], [0], [0], [1], [0, 0, 1, 1], [], []>} : vector<16x128xf32>, vector<128x128xf32>, vector<16x128xf32> -> vector<16x128xf32>
    %c0_11 = arith.constant 0 : index
    %c0_12 = arith.constant 0 : index
    %17 = vector.load %arg6[%c0_11, %c0_12] : memref<1x128xf32, #tpu.memory_space<vmem>>, vector<1x128xf32>
    %18 = vector.broadcast %17 : vector<1x128xf32> to vector<16x128xf32>
    %19 = arith.addf %16, %18 : vector<16x128xf32>
    %20 = vector.shape_cast %19 : vector<16x128xf32> to vector<2x8x128xf32>
    %c0_13 = arith.constant 0 : index
    %c0_14 = arith.constant 0 : index
    %c0_15 = arith.constant 0 : index
    %21 = vector.load %arg7[%c0_13, %c0_14, %c0_15] : memref<2x8x128xf32, #tpu.memory_space<vmem>>, vector<2x8x128xf32>
    tpu.vector_store %arg7[%c0_13, %c0_14, %c0_15], %20 {strides = array<i32>} : memref<2x8x128xf32, #tpu.memory_space<vmem>>, vector<2x8x128xf32>,
    return
  }
  func.func @transform_0(%arg0: i32, %arg1: i32) -> (i32, i32, i32) {
    %c0_i32 = arith.constant 0 : i32
    %c0_i32_0 = arith.constant 0 : i32
    return %arg0, %arg1, %c0_i32 : i32, i32, i32
  }
  func.func @transform_1(%arg0: i32, %arg1: i32) -> (i32, i32, i32) {
    %c0_i32 = arith.constant 0 : i32
    %c0_i32_0 = arith.constant 0 : i32
    %c0_i32_1 = arith.constant 0 : i32
    return %arg0, %c0_i32, %c0_i32_0 : i32, i32, i32
  }
  func.func @transform_2(%arg0: i32, %arg1: i32) -> (i32, i32) {
    %c0_i32 = arith.constant 0 : i32
    %c0_i32_0 = arith.constant 0 : i32
    %c0_i32_1 = arith.constant 0 : i32
    return %c0_i32, %c0_i32_0 : i32, i32
  }
  func.func @transform_3(%arg0: i32, %arg1: i32) -> (i32, i32) {
    %c0_i32 = arith.constant 0 : i32
    %c0_i32_0 = arith.constant 0 : i32
    %c0_i32_1 = arith.constant 0 : i32
    return %c0_i32, %c0_i32_0 : i32, i32
  }
  func.func @transform_4(%arg0: i32, %arg1: i32) -> (i32, i32) {
    %c0_i32 = arith.constant 0 : i32
    %c0_i32_0 = arith.constant 0 : i32
    %c0_i32_1 = arith.constant 0 : i32
    return %c0_i32, %c0_i32_0 : i32, i32
  }
  func.func @transform_5(%arg0: i32, %arg1: i32) -> (i32, i32, i32) {
    %c0_i32 = arith.constant 0 : i32
    %c0_i32_0 = arith.constant 0 : i32
    return %arg0, %arg1, %c0_i32 : i32, i32, i32
  }
}

</mosaic_0001>

<llo_original>
// kernel: tpu_custom_call.1
$region0: #{tpu_custom_call.1}
  #allocation0 [shape = 'u32[]', space=smem, size = 0x4, offset = 0x4, fixed_abs, tag = 'smem constant byte address 0x4 - core index']
  #allocation1 [shape = 'u32[144,128]{1,0:T(1,128)}', space=vmem, size = 0x12000, scoped, tag = 'internal scratch']
  %s0 = inlined_call_operand.vmem [shape: f32[2,8,4], index: 0, kind: input, shape index: {}]
  %s1 = inlined_call_operand.vmem [shape: f32[2,1,128], index: 1, kind: input, shape index: {}]
  %s2 = inlined_call_operand.vmem [shape: f32[4,128], index: 2, kind: input, shape index: {}]
  %s3 = inlined_call_operand.hbm [shape: f32[128,128], index: 3, kind: input, shape index: {}]
  %s4 = inlined_call_operand.vmem [shape: f32[1,128], index: 4, kind: input, shape index: {}]
  %s5 = inlined_call_operand.hbm [shape: f32[2,8,128], index: 5, kind: output, shape index: {}]
  %s6 = sld [smem:[#allocation0]]
  $region34: #{tpu_custom_call.1} parent=0
    _
  %s8 = ssub.s32 1, %s6
  %s9 = scalar_select 0, %s8, %s6
  $region1: #{tpu_custom_call.1} parent=0
    #allocation2 [shape = 'u8[65536]{0}', space=vmem, size = 0x10000, scoped, tag = 'input window, operand 3, single buffered']
    #allocation3 [shape = 's32[1]{0}', space=sflag, size = 0x4, scoped, tag = 'scoped memory for tpu_custom_call.1']
    #allocation4 [shape = 's32[1]{0}', space=sflag, size = 0x4, scoped, tag = 'scoped memory for tpu_custom_call.1']
    #allocation5 [shape = 'u8[8192]{0}', space=vmem, size = 0x2000, scoped, tag = 'output window, operand 0, single buffered']
    %10 = vsyncpa [#allocation3], 0
    %11 = vsyncpa [#allocation4], 0
    // Predicated region
    $region2: #{tpu_custom_call.1} parent=1 // pred_check
      _
    $region3: #{tpu_custom_call.1} parent=1 // pred_check_branch
      %13 = sbr.rel (0) target = $region5
    $region4: #{tpu_custom_call.1} parent=1 // pred_region
      _
    $region5: #{tpu_custom_call.1} parent=1 // pred_fallthru
      _
    // Predicated region
    $region6: #{tpu_custom_call.1} parent=1 // pred_check
      _
    $region7: #{tpu_custom_call.1} parent=1 // pred_check_branch
      %15 = sbr.rel (0) target = $region9
    $region8: #{tpu_custom_call.1} parent=1 // pred_region
      _
    $region9: #{tpu_custom_call.1} parent=1 // pred_fallthru
      _
    // Predicated region
    $region10: #{tpu_custom_call.1} parent=1 // pred_check
      _
    $region11: #{tpu_custom_call.1} parent=1 // pred_check_branch
      %17 = sbr.rel (0) target = $region13
    $region12: #{tpu_custom_call.1} parent=1 // pred_region
      _
    $region13: #{tpu_custom_call.1} parent=1 // pred_fallthru
      _
    // Predicated region
    $region14: #{tpu_custom_call.1} parent=1 // pred_check
      _
    $region15: #{tpu_custom_call.1} parent=1 // pred_check_branch
      %19 = sbr.rel (0) target = $region17
    $region16: #{tpu_custom_call.1} parent=1 // pred_region
      %s21 = ssub.s32 2048, 2048
      %22 = vsyncadd [#allocation3], %s21
      %s23 = sshll.u32 [#allocation2], 4
      %s24 = int_to_ptr.vmem [resolvable:$true] %s23
      %29 = dma.hbm_to_vmem [thread:$0]  %s3, 2048, %s24, [#allocation3], 128, 128, 8
    $region17: #{tpu_custom_call.1} parent=1 // pred_fallthru
      _
    // Predicated region
    $region18: #{tpu_custom_call.1} parent=1 // pred_check
      _
    $region19: #{tpu_custom_call.1} parent=1 // pred_check_branch
      %31 = sbr.rel (0) target = $region21
    $region20: #{tpu_custom_call.1} parent=1 // pred_region
      _
    $region21: #{tpu_custom_call.1} parent=1 // pred_fallthru
      _
    // Predicated region
    $region22: #{tpu_custom_call.1} parent=1 // pred_check
      _
    $region23: #{tpu_custom_call.1} parent=1 // pred_check_branch
      %33 = sbr.rel (0) target = $region25
    $region24: #{tpu_custom_call.1} parent=1 // pred_region
      %34 = dma.done [#allocation3], 2048
    $region25: #{tpu_custom_call.1} parent=1 // pred_fallthru
      _
    %v35 = vld [vmem:[%s0] sm:$0xff]
    %v36 = vld [vmem:[%s0 + $0x8] sm:$0xff]
    %v37 = vld [vmem:[%s2] sm:$0xf]
    %vm38 = vcmask 31744
    %v40 = vsel %vm38, %v35, 0
    %v43 = vsel %vm38, %v36, 0
    %vm45 = vcmask 1043456
    %v47 = vsel %vm45, %v37, 0
    %49 = vmatprep.subr.mxu0 0.0
    %50 = vmatpush1.msra.mxu0 %v47
    %51 = vmatprep.subr.mxu0 0.0
    %52 = vmatpush1.msra.mxu0 0.0
    %53 = vmatprep.subr.mxu0 0.0
    %54 = vmatpush1.msra.mxu0 0.0
    %55 = vmatprep.subr.mxu0 0.0
    %56 = vmatpush1.msra.mxu0 0.0
    %57 = vmatprep.subr.mxu0 0.0
    %58 = vmatpush1.msra.mxu0 0.0
    %59 = vmatprep.subr.mxu0 0.0
    %60 = vmatpush1.msra.mxu0 0.0
    %61 = vmatprep.subr.mxu0 0.0
    %62 = vmatpush1.msra.mxu0 0.0
    %63 = vmatprep.subr.mxu0 0.0
    %64 = vmatpush1.msra.mxu0 0.0
    %65 = vmatprep.subr.mxu0 0.0
    %66 = vmatpush1.msra.mxu0 0.0
    %67 = vmatprep.subr.mxu0 0.0
    %68 = vmatpush1.msra.mxu0 0.0
    %69 = vmatprep.subr.mxu0 0.0
    %70 = vmatpush1.msra.mxu0 0.0
    %71 = vmatprep.subr.mxu0 0.0
    %72 = vmatpush1.msra.mxu0 0.0
    %73 = vmatprep.subr.mxu0 0.0
    %74 = vmatpush1.msra.mxu0 0.0
    %75 = vmatprep.subr.mxu0 0.0
    %76 = vmatpush1.msra.mxu0 0.0
    %77 = vmatprep.subr.mxu0 0.0
    %78 = vmatpush1.msra.mxu0 0.0
    %79 = vmatprep.subr.mxu0 0.0
    %80 = vmatpush1.msra.mxu0 0.0
    %81 = vmatprep.subr.mxu0 0.0
    %82 = vmatpush1.msra.mxu0 0.0
    %83 = vmatprep.subr.mxu0 0.0
    %84 = vmatpush1.msra.mxu0 0.0
    %85 = vmatprep.subr.mxu0 0.0
    %86 = vmatpush1.msra.mxu0 0.0
    %87 = vmatprep.subr.mxu0 0.0
    %88 = vmatpush1.msra.mxu0 0.0
    %89 = vmatprep.subr.mxu0 0.0
    %90 = vmatpush1.msra.mxu0 0.0
    %91 = vmatprep.subr.mxu0 0.0
    %92 = vmatpush1.msra.mxu0 0.0
    %93 = vmatprep.subr.mxu0 0.0
    %94 = vmatpush1.msra.mxu0 0.0
    %95 = vmatprep.subr.mxu0 0.0
    %96 = vmatpush1.msra.mxu0 0.0
    %97 = vmatprep.subr.mxu0 0.0
    %98 = vmatpush1.msra.mxu0 0.0
    %99 = vmatprep.subr.mxu0 0.0
    %100 = vmatpush1.msra.mxu0 0.0
    %101 = vmatprep.subr.mxu0 0.0
    %102 = vmatpush1.msra.mxu0 0.0
    %103 = vmatprep.subr.mxu0 0.0
    %104 = vmatpush1.msra.mxu0 0.0
    %105 = vmatprep.subr.mxu0 0.0
    %106 = vmatpush1.msra.mxu0 0.0
    %107 = vmatprep.subr.mxu0 0.0
    %108 = vmatpush1.msra.mxu0 0.0
    %109 = vmatprep.subr.mxu0 0.0
    %110 = vmatpush1.msra.mxu0 0.0
    %111 = vmatprep.subr.mxu0 0.0
    %112 = vmatpush1.msra.mxu0 0.0
    %113 = vmatprep.mubr.f32.mxu0 0.0
    %114 = vmatmul.mubr.f32.gmra.mrb[0].mxu0 %v40
    %v115 = vpop.f32.mrb[0].mxu0
    %v116 = vadd.f32 0.0, %v115
    %v117 = vpop.f32.mrb[0].mxu0
    %118 = vmatprep.mubr.f32.mxu0 0.0
    %119 = vmatmul.mubr.f32.gmra.mrb[0].mxu0 %v43
    %v120 = vpop.f32.mrb[0].mxu0
    %v121 = vadd.f32 0.0, %v120
    %v122 = vpop.f32.mrb[0].mxu0
    %123 = vdwg.mxu0
    %v124 = vld [vmem:[%s1] sm:$0x1]
    %v125 = vld [vmem:[%s1 + $0x1] sm:$0x1]
    %v128 = vlaneseq
    %v129 = vshrl.u32 %v128, 7
    %v130 = vsub.s32 0, %v129
    %v131 = vrot.slane %v124, %v130
    %v132 = vlaneseq
    %v133 = vshrl.u32 %v132, 7
    %v134 = vsub.s32 0, %v133
    %v135 = vrot.slane %v125, %v134
    %v138 = vadd.f32 %v116, %v131
    %v139 = vadd.f32 %v121, %v135
    %v140 = vxor.u32 %v138, 2147483648
    %v141 = vxor.u32 %v139, 2147483648
    %v142 = vmul.f32 %v140, 1.442695
    %v143 = vpow.pop %v142
    %v144 = vmul.f32 %v141, 1.442695
    %v145 = vpow.pop %v144
    %v146 = vadd.f32 %v143, 1.0
    %v147 = vadd.f32 %v145, 1.0
    %v148 = vrcp.pop %v146
    %v149 = vmul.f32 1.0, %v148
    %v150 = vrcp.pop %v147
    %v151 = vmul.f32 1.0, %v150
    %v152 = vmul.f32 %v138, %v149
    %v153 = vmul.f32 %v139, %v151
    %v154 = vld [vmem:[#allocation2] sm:$0xff]
    %v155 = vld [vmem:[#allocation2 + $0x8] sm:$0xff]
    %v156 = vld [vmem:[#allocation2 + $0x10] sm:$0xff]
    %v157 = vld [vmem:[#allocation2 + $0x18] sm:$0xff]
    %v158 = vld [vmem:[#allocation2 + $0x20] sm:$0xff]
    %v159 = vld [vmem:[#allocation2 + $0x28] sm:$0xff]
    %v160 = vld [vmem:[#allocation2 + $0x30] sm:$0xff]
    %v161 = vld [vmem:[#allocation2 + $0x38] sm:$0xff]
    %v162 = vld [vmem:[#allocation2 + $0x40] sm:$0xff]
    %v163 = vld [vmem:[#allocation2 + $0x48] sm:$0xff]
    %v164 = vld [vmem:[#allocation2 + $0x50] sm:$0xff]
    %v165 = vld [vmem:[#allocation2 + $0x58] sm:$0xff]
    %v166 = vld [vmem:[#allocation2 + $0x60] sm:$0xff]
    %v167 = vld [vmem:[#allocation2 + $0x68] sm:$0xff]
    %v168 = vld [vmem:[#allocation2 + $0x70] sm:$0xff]
    %v169 = vld [vmem:[#allocation2 + $0x78] sm:$0xff]
    %v170 = vld [vmem:[%s4] sm:$0x1]
    %v172 = vlaneseq
    %v173 = vshrl.u32 %v172, 7
    %v174 = vsub.s32 0, %v173
    %v175 = vrot.slane %v170, %v174
    %177 = vmatprep.subr.mxu0 0.0
    %178 = vmatpush1.msra.mxu0 %v154
    %179 = vmatprep.subr.mxu0 0.0
    %180 = vmatpush1.msra.mxu0 %v155
    %181 = vmatprep.subr.mxu0 0.0
    %182 = vmatpush1.msra.mxu0 %v156
    %183 = vmatprep.subr.mxu0 0.0
    %184 = vmatpush1.msra.mxu0 %v157
    %185 = vmatprep.subr.mxu0 0.0
    %186 = vmatpush1.msra.mxu0 %v158
    %187 = vmatprep.subr.mxu0 0.0
    %188 = vmatpush1.msra.mxu0 %v159
    %189 = vmatprep.subr.mxu0 0.0
    %190 = vmatpush1.msra.mxu0 %v160
    %191 = vmatprep.subr.mxu0 0.0
    %192 = vmatpush1.msra.mxu0 %v161
    %193 = vmatprep.subr.mxu0 0.0
    %194 = vmatpush1.msra.mxu0 %v162
    %195 = vmatprep.subr.mxu0 0.0
    %196 = vmatpush1.msra.mxu0 %v163
    %197 = vmatprep.subr.mxu0 0.0
    %198 = vmatpush1.msra.mxu0 %v164
    %199 = vmatprep.subr.mxu0 0.0
    %200 = vmatpush1.msra.mxu0 %v165
    %201 = vmatprep.subr.mxu0 0.0
    %202 = vmatpush1.msra.mxu0 %v166
    %203 = vmatprep.subr.mxu0 0.0
    %204 = vmatpush1.msra.mxu0 %v167
    %205 = vmatprep.subr.mxu0 0.0
    %206 = vmatpush1.msra.mxu0 %v168
    %207 = vmatprep.subr.mxu0 0.0
    %208 = vmatpush1.msra.mxu0 %v169
    %209 = vmatprep.subr.mxu0 0.0
    %210 = vmatpush1.msra.mxu0 0.0
    %211 = vmatprep.subr.mxu0 0.0
    %212 = vmatpush1.msra.mxu0 0.0
    %213 = vmatprep.subr.mxu0 0.0
    %214 = vmatpush1.msra.mxu0 0.0
    %215 = vmatprep.subr.mxu0 0.0
    %216 = vmatpush1.msra.mxu0 0.0
    %217 = vmatprep.subr.mxu0 0.0
    %218 = vmatpush1.msra.mxu0 0.0
    %219 = vmatprep.subr.mxu0 0.0
    %220 = vmatpush1.msra.mxu0 0.0
    %221 = vmatprep.subr.mxu0 0.0
    %222 = vmatpush1.msra.mxu0 0.0
    %223 = vmatprep.subr.mxu0 0.0
    %224 = vmatpush1.msra.mxu0 0.0
    %225 = vmatprep.subr.mxu0 0.0
    %226 = vmatpush1.msra.mxu0 0.0
    %227 = vmatprep.subr.mxu0 0.0
    %228 = vmatpush1.msra.mxu0 0.0
    %229 = vmatprep.subr.mxu0 0.0
    %230 = vmatpush1.msra.mxu0 0.0
    %231 = vmatprep.subr.mxu0 0.0
    %232 = vmatpush1.msra.mxu0 0.0
    %233 = vmatprep.subr.mxu0 0.0
    %234 = vmatpush1.msra.mxu0 0.0
    %235 = vmatprep.subr.mxu0 0.0
    %236 = vmatpush1.msra.mxu0 0.0
    %237 = vmatprep.subr.mxu0 0.0
    %238 = vmatpush1.msra.mxu0 0.0
    %239 = vmatprep.subr.mxu0 0.0
    %240 = vmatpush1.msra.mxu0 0.0
    %241 = vmatprep.mubr.f32.mxu0 0.0
    %242 = vmatmul.mubr.f32.gmra.mrb[0].mxu0 %v152
    %v243 = vpop.f32.mrb[0].mxu0
    %v244 = vadd.f32 %v175, %v243
    %v245 = vpop.f32.mrb[0].mxu0
    %246 = vmatprep.mubr.f32.mxu0 0.0
    %247 = vmatmul.mubr.f32.gmra.mrb[0].mxu0 %v153
    %v248 = vpop.f32.mrb[0].mxu0
    %v249 = vadd.f32 %v175, %v248
    %v250 = vpop.f32.mrb[0].mxu0
    %251 = vdwg.mxu0
    %252 = vst [vmem:[#allocation5] sm:$0xff] %v244
    %253 = vst [vmem:[#allocation5 + $0x8] sm:$0xff] %v249
    // Predicated region
    $region26: #{tpu_custom_call.1} parent=1 // pred_check
      _
    $region27: #{tpu_custom_call.1} parent=1 // pred_check_branch
      %255 = sbr.rel (0) target = $region29
    $region28: #{tpu_custom_call.1} parent=1 // pred_region
      %s257 = ssub.s32 256, 256
      %258 = vsyncadd [#allocation4], %s257
      %s259 = sshll.u32 [#allocation5], 4
      %s260 = int_to_ptr.vmem [resolvable:$true] %s259
      %265 = dma.vmem_to_hbm [thread:$0]  %s260, 256, %s5, [#allocation4], 128, 128, 8
    $region29: #{tpu_custom_call.1} parent=1 // pred_fallthru
      _
    // Predicated region
    $region30: #{tpu_custom_call.1} parent=1 // pred_check
      _
    $region31: #{tpu_custom_call.1} parent=1 // pred_check_branch
      %267 = sbr.rel (0) target = $region33
    $region32: #{tpu_custom_call.1} parent=1 // pred_region
      %268 = dma.done [#allocation4], 256
    $region33: #{tpu_custom_call.1} parent=1 // pred_fallthru
      _
    %269 = vsyncpa [#allocation3], 1
    %270 = vsyncpa [#allocation4], 1

</llo_original>
